<compile_context>
chip_gen: v6e
topology: v6e:2x2x1
jax: 0.10.0
libtpu: 0.0.40
codegen_flags: <defaults>
</compile_context>

<pallas_src>
import jax
import jax.numpy as jnp
from jax.experimental import pallas as pl
from jax.experimental.pallas import tpu as pltpu


def _round_up(x, m):
    return ((x + m - 1) // m) * m


def _vmem_capacity_bytes():
    """Physical VMEM per TensorCore; conservative v7x fallback if unknown."""
    cap = 64 * 1024 * 1024
    try:
        info = pltpu.get_tpu_info()
        cap = int(getattr(info, "vmem_capacity_bytes", cap)) or cap
    except Exception:
        pass
    return cap


def _linear_kernel_fullk(x_ref, w_ref, b_ref, o_ref):
    """Full-K path: out(tm,tn) = x(tm,K) @ w(K,tn) + b(1,tn), written once."""
    o_ref[...] = (
        jnp.dot(x_ref[...], w_ref[...], preferred_element_type=jnp.float32)
        + b_ref[...]
    ).astype(o_ref.dtype)


def _linear_kernel_ktiled(x_ref, w_ref, b_ref, o_ref, acc_ref):
    """K-tiled fallback with an f32 VMEM accumulator; bias added on last step."""
    k = pl.program_id(2)

    @pl.when(k == 0)
    def _():
        acc_ref[...] = jnp.zeros_like(acc_ref)

    acc_ref[...] += jnp.dot(
        x_ref[...], w_ref[...], preferred_element_type=jnp.float32
    )

    @pl.when(k == pl.num_programs(2) - 1)
    def _():
        o_ref[...] = (acc_ref[...] + b_ref[...]).astype(o_ref.dtype)


def linear_forward(x, weight, bias=None, *, vmem_budget_bytes=None):
    """x: (B, K), weight: (N, K) [PyTorch nn.Linear layout], bias: (N,) or None -> (B, N)."""
    B, K = x.shape
    N, K2 = weight.shape
    assert K == K2
    if bias is not None:
        assert bias.shape == (N,)

    itemsize = 4  # f32 working set estimate

    cap = _vmem_capacity_bytes()
    budget = vmem_budget_bytes if vmem_budget_bytes is not None else (cap * 3) // 4

    # ---- N: pad (weight/bias only) to a lane-dense multiple of 128 ----------
    Np = _round_up(N, 128)

    # ---- M tiling: prefer a full-M block so x needs no padding --------------
    if B <= 1024:
        tm = B
        Mp = B
    else:
        tm = next((t for t in (1024, 512, 256, 128, 64, 32, 16, 8) if B % t == 0), 512)
        Mp = _round_up(B, tm)

    # ---- N tiling: largest 128-multiple tile <= 512 dividing Np -------------
    tn = next(t for t in (512, 384, 256, 128) if Np % t == 0)

    # Guarantee >= 2 blocks on a "parallel" axis when cheaply possible so both
    # v7x TensorCores get work (single-tile toy shapes stay as one block).
    if (Mp // tm) * (Np // tn) == 1 and Np >= 256:
        tn = next(t for t in (Np // 2, 256, 128) if Np % t == 0 and t % 128 == 0)

    def fullk_footprint(tm_, tn_):
        # double-buffered x, w, out tiles + (tiny) bias
        return itemsize * (2 * tm_ * K + 2 * K * tn_ + 2 * tm_ * tn_ + 2 * tn_)

    use_fullk = fullk_footprint(tm, tn) <= budget
    if not use_fullk and tn > 128 and fullk_footprint(tm, 128) <= budget:
        tn = 128
        use_fullk = True

    # One-time parameter prep: canonical (K, N) layout for the MXU, lane-dense
    # N padding.  Amortized in real use (weight/bias are persistent parameters).
    w_t = weight.T
    b_vec = bias if bias is not None else jnp.zeros((N,), dtype=x.dtype)

    cost = pl.CostEstimate(
        flops=2 * B * N * K,
        bytes_accessed=itemsize * (B * K + N * K + B * N + N),
        transcendentals=0,
    )
    vmem_cap_limit = (cap * 3) // 4

    if use_fullk:
        xp = x if Mp == B else jnp.pad(x, ((0, Mp - B), (0, 0)))
        wp = w_t if Np == N else jnp.pad(w_t, ((0, 0), (0, Np - N)))
        bp = (b_vec if Np == N else jnp.pad(b_vec, (0, Np - N))).reshape(1, Np)

        footprint = fullk_footprint(tm, tn)
        vmem_limit = min(vmem_cap_limit, max(32 * 1024 * 1024, 2 * footprint))

        grid = (Mp // tm, Np // tn)
        out_padded = pl.pallas_call(
            _linear_kernel_fullk,
            out_shape=jax.ShapeDtypeStruct((Mp, Np), x.dtype),
            grid=grid,
            in_specs=[
                pl.BlockSpec((tm, K), lambda i, j: (i, 0)),   # x, full K resident
                pl.BlockSpec((K, tn), lambda i, j: (0, j)),   # weight.T (K, N)
                pl.BlockSpec((1, tn), lambda i, j: (0, j)),   # bias
            ],
            out_specs=pl.BlockSpec((tm, tn), lambda i, j: (i, j)),
            compiler_params=pltpu.CompilerParams(
                dimension_semantics=("parallel", "parallel"),
                vmem_limit_bytes=vmem_limit,
            ),
            cost_estimate=cost,
        )(xp, wp, bp)
    else:
        # K-tiled fallback (huge K / tiny VMEM): f32 accumulator, K axis last.
        tn_b = next(t for t in (256, 128) if Np % t == 0)

        def ktiled_footprint(tk_):
            return itemsize * (2 * tm * tk_ + 2 * tk_ * tn_b + 3 * tm * tn_b + 2 * tn_b)

        tk = next(
            (t for t in (2048, 1024, 512, 256, 128) if ktiled_footprint(t) <= budget),
            128,
        )
        Kp = _round_up(K, tk)

        xp = x if (Mp == B and Kp == K) else jnp.pad(x, ((0, Mp - B), (0, Kp - K)))
        wp = w_t if (Np == N and Kp == K) else jnp.pad(w_t, ((0, Kp - K), (0, Np - N)))
        bp = (b_vec if Np == N else jnp.pad(b_vec, (0, Np - N))).reshape(1, Np)

        footprint = ktiled_footprint(tk)
        vmem_limit = min(vmem_cap_limit, max(32 * 1024 * 1024, 2 * footprint))

        grid = (Mp // tm, Np // tn_b, Kp // tk)
        out_padded = pl.pallas_call(
            _linear_kernel_ktiled,
            out_shape=jax.ShapeDtypeStruct((Mp, Np), x.dtype),
            grid=grid,
            in_specs=[
                pl.BlockSpec((tm, tk), lambda i, j, k: (i, k)),     # x
                pl.BlockSpec((tk, tn_b), lambda i, j, k: (k, j)),   # weight.T (K, N)
                pl.BlockSpec((1, tn_b), lambda i, j, k: (0, j)),    # bias (ignores k)
            ],
            out_specs=pl.BlockSpec((tm, tn_b), lambda i, j, k: (i, j)),
            scratch_shapes=[pltpu.VMEM((tm, tn_b), jnp.float32)],
            compiler_params=pltpu.CompilerParams(
                dimension_semantics=("parallel", "parallel", "arbitrary"),
                vmem_limit_bytes=vmem_limit,
            ),
            cost_estimate=cost,
        )(xp, wp, bp)

    if Mp == B and Np == N:
        return out_padded
    return out_padded[:B, :N]


if __name__ == "__main__":
    key = jax.random.PRNGKey(0)

    # Case 1: the module's toy shapes — Linear(32 -> 16), batch 8 (full-K path,
    # single block).
    B, IN_F, OUT_F = 8, 32, 16
    k1, k2, k3, key = jax.random.split(key, 4)
    x = jax.random.normal(k1, (B, IN_F), dtype=jnp.float32)
    weight = jax.random.uniform(k2, (OUT_F, IN_F), jnp.float32, minval=-0.1, maxval=0.1)
    bias = jax.random.uniform(k3, (OUT_F,), jnp.float32, minval=-0.1, maxval=0.1)

    out = jax.block_until_ready(linear_forward(x, weight, bias))
    ref = x @ weight.T + bias
    assert out.shape == (B, OUT_F)
    assert jnp.allclose(out, ref, atol=1e-5, rtol=1e-5)

    # Case 2: larger shapes — full-K path with the N axis split into two
    # parallel blocks (exercises the multi-block grid, no activation padding).
    B2, IN2, OUT2 = 256, 384, 256
    k4, k5, k6, key = jax.random.split(key, 4)
    x2 = jax.random.normal(k4, (B2, IN2), dtype=jnp.float32)
    w2 = jax.random.uniform(k5, (OUT2, IN2), jnp.float32, minval=-0.1, maxval=0.1)
    b2 = jax.random.uniform(k6, (OUT2,), jnp.float32, minval=-0.1, maxval=0.1)

    out2 = jax.block_until_ready(linear_forward(x2, w2, b2))
    ref2 = x2 @ w2.T + b2
    assert out2.shape == (B2, OUT2)
    # Loose tolerance: MXU default f32 precision differs from the XLA reference.
    assert jnp.allclose(out2, ref2, atol=1e-2, rtol=1e-2)

    # Case 3: force the K-tiled accumulator fallback with a tiny VMEM budget
    # (exercises the pl.when init/finalize and the (k, j)-indexed weight tiles).
    B3, IN3, OUT3 = 64, 512, 128
    k7, k8, k9, key = jax.random.split(key, 4)
    x3 = jax.random.normal(k7, (B3, IN3), dtype=jnp.float32)
    w3 = jax.random.uniform(k8, (OUT3, IN3), jnp.float32, minval=-0.1, maxval=0.1)
    b3 = jax.random.uniform(k9, (OUT3,), jnp.float32, minval=-0.1, maxval=0.1)

    out3 = jax.block_until_ready(
        linear_forward(x3, w3, b3, vmem_budget_bytes=600 * 1024)
    )
    ref3 = x3 @ w3.T + b3
    assert out3.shape == (B3, OUT3)
    assert jnp.allclose(out3, ref3, atol=1e-2, rtol=1e-2)

    # TODO(synk): LinearFunction.backward (grad_input / grad_weight / grad_bias)
    # is not implemented; only the forward pass is translated.
    print("KERNEL_OK")
</pallas_src>

<mosaic_0001>
module attributes {stable_mosaic.version = 11 : i64} {
  func.func @_linear_kernel_fullk(%arg0: i32, %arg1: i32, %arg2: memref<8x32xf32, #tpu.memory_space<vmem>>, %arg3: memref<32x128xf32, #tpu.memory_space<vmem>>, %arg4: memref<1x128xf32, #tpu.memory_space<vmem>>, %arg5: memref<8x128xf32, #tpu.memory_space<vmem>>) attributes {dimension_semantics = [#tpu.dimension_semantics<parallel>, #tpu.dimension_semantics<parallel>], iteration_bounds = array<i64: 1, 1>, scalar_prefetch = 0 : i64, scratch_operands = 0 : i64, tpu.core_type = #tpu.core_type<tc>, window_params = [{transform_indices = @transform_0, window_bounds = array<i64: 8, 32>}, {transform_indices = @transform_1, window_bounds = array<i64: 32, 128>}, {transform_indices = @transform_2, window_bounds = array<i64: 1, 128>}, {transform_indices = @transform_3, window_bounds = array<i64: 8, 128>}]} {
    %c0 = arith.constant 0 : index
    %c0_0 = arith.constant 0 : index
    %0 = vector.load %arg2[%c0, %c0_0] : memref<8x32xf32, #tpu.memory_space<vmem>>, vector<8x32xf32>
    %c0_1 = arith.constant 0 : index
    %c0_2 = arith.constant 0 : index
    %1 = vector.load %arg3[%c0_1, %c0_2] : memref<32x128xf32, #tpu.memory_space<vmem>>, vector<32x128xf32>
    %cst = arith.constant dense<0.000000e+00> : vector<8x128xf32>
    %2 = tpu.matmul %0, %1, %cst {dimension_numbers = #tpu.dot_dimension_numbers<[1], [0], [0], [1], [0, 0, 1, 1], [], []>} : vector<8x32xf32>, vector<32x128xf32>, vector<8x128xf32> -> vector<8x128xf32>
    %c0_3 = arith.constant 0 : index
    %c0_4 = arith.constant 0 : index
    %3 = vector.load %arg4[%c0_3, %c0_4] : memref<1x128xf32, #tpu.memory_space<vmem>>, vector<1x128xf32>
    %4 = vector.broadcast %3 : vector<1x128xf32> to vector<8x128xf32>
    %5 = arith.addf %2, %4 : vector<8x128xf32>
    %c0_5 = arith.constant 0 : index
    %c0_6 = arith.constant 0 : index
    %6 = vector.load %arg5[%c0_5, %c0_6] : memref<8x128xf32, #tpu.memory_space<vmem>>, vector<8x128xf32>
    tpu.vector_store %arg5[%c0_5, %c0_6], %5 {strides = array<i32>} : memref<8x128xf32, #tpu.memory_space<vmem>>, vector<8x128xf32>,
    return
  }
  func.func @transform_0(%arg0: i32, %arg1: i32) -> (i32, i32) {
    %c0_i32 = arith.constant 0 : i32
    %c0_i32_0 = arith.constant 0 : i32
    return %arg0, %c0_i32 : i32, i32
  }
  func.func @transform_1(%arg0: i32, %arg1: i32) -> (i32, i32) {
    %c0_i32 = arith.constant 0 : i32
    %c0_i32_0 = arith.constant 0 : i32
    return %c0_i32, %arg1 : i32, i32
  }
  func.func @transform_2(%arg0: i32, %arg1: i32) -> (i32, i32) {
    %c0_i32 = arith.constant 0 : i32
    %c0_i32_0 = arith.constant 0 : i32
    return %c0_i32, %arg1 : i32, i32
  }
  func.func @transform_3(%arg0: i32, %arg1: i32) -> (i32, i32) {
    %c0_i32 = arith.constant 0 : i32
    return %arg0, %arg1 : i32, i32
  }
}

</mosaic_0001>

<llo_original>
// kernel: tpu_custom_call.1
$region0: #{tpu_custom_call.1}
  #allocation0 [shape = 'u32[]', space=smem, size = 0x4, offset = 0x4, fixed_abs, tag = 'smem constant byte address 0x4 - core index']
  #allocation1 [shape = 'u32[144,128]{1,0:T(1,128)}', space=vmem, size = 0x12000, scoped, tag = 'internal scratch']
  %s0 = inlined_call_operand.hbm [shape: f32[8,32], index: 0, kind: input, shape index: {}]
  %s1 = inlined_call_operand.hbm [shape: f32[32,128], index: 1, kind: input, shape index: {}]
  %s2 = inlined_call_operand.vmem [shape: f32[1,128], index: 2, kind: input, shape index: {}]
  %s3 = inlined_call_operand.hbm [shape: f32[8,128], index: 3, kind: output, shape index: {}]
  %s4 = sld [smem:[#allocation0]]
  $region30: #{tpu_custom_call.1} parent=0
    _
  %s6 = ssub.s32 1, %s4
  %s7 = scalar_select 0, %s6, %s4
  $region1: #{tpu_custom_call.1} parent=0
    #allocation2 [shape = 'u8[4096]{0}', space=vmem, size = 0x1000, scoped, tag = 'input window, operand 0, single buffered']
    #allocation3 [shape = 's32[1]{0}', space=sflag, size = 0x4, scoped, tag = 'scoped memory for tpu_custom_call.1']
    #allocation4 [shape = 's32[1]{0}', space=sflag, size = 0x4, scoped, tag = 'scoped memory for tpu_custom_call.1']
    #allocation5 [shape = 'u8[16384]{0}', space=vmem, size = 0x4000, scoped, tag = 'input window, operand 1, single buffered']
    #allocation6 [shape = 's32[1]{0}', space=sflag, size = 0x4, scoped, tag = 'scoped memory for tpu_custom_call.1']
    #allocation7 [shape = 'u8[4096]{0}', space=vmem, size = 0x1000, scoped, tag = 'output window, operand 0, single buffered']
    %8 = vsyncpa [#allocation3], 0
    %9 = vsyncpa [#allocation6], 0
    %10 = vsyncpa [#allocation4], 0
    // Predicated region
    $region2: #{tpu_custom_call.1} parent=1 // pred_check
      _
    $region3: #{tpu_custom_call.1} parent=1 // pred_check_branch
      %12 = sbr.rel (0) target = $region5
    $region4: #{tpu_custom_call.1} parent=1 // pred_region
      %s14 = ssub.s32 128, 128
      %15 = vsyncadd [#allocation3], %s14
      %s17 = sshll.u32 [#allocation2], 4
      %s18 = int_to_ptr.vmem [resolvable:$true] %s17
      %20 = dma.hbm_to_vmem [thread:$0]  %s0, 128, %s18, [#allocation3]
    $region5: #{tpu_custom_call.1} parent=1 // pred_fallthru
      _
    // Predicated region
    $region6: #{tpu_custom_call.1} parent=1 // pred_check
      _
    $region7: #{tpu_custom_call.1} parent=1 // pred_check_branch
      %22 = sbr.rel (0) target = $region9
    $region8: #{tpu_custom_call.1} parent=1 // pred_region
      %s24 = ssub.s32 512, 512
      %25 = vsyncadd [#allocation6], %s24
      %s26 = sshll.u32 [#allocation5], 4
      %s27 = int_to_ptr.vmem [resolvable:$true] %s26
      %32 = dma.hbm_to_vmem [thread:$0]  %s1, 512, %s27, [#allocation6], 128, 128, 8
    $region9: #{tpu_custom_call.1} parent=1 // pred_fallthru
      _
    // Predicated region
    $region10: #{tpu_custom_call.1} parent=1 // pred_check
      _
    $region11: #{tpu_custom_call.1} parent=1 // pred_check_branch
      %34 = sbr.rel (0) target = $region13
    $region12: #{tpu_custom_call.1} parent=1 // pred_region
      _
    $region13: #{tpu_custom_call.1} parent=1 // pred_fallthru
      _
    // Predicated region
    $region14: #{tpu_custom_call.1} parent=1 // pred_check
      _
    $region15: #{tpu_custom_call.1} parent=1 // pred_check_branch
      %36 = sbr.rel (0) target = $region17
    $region16: #{tpu_custom_call.1} parent=1 // pred_region
      %37 = dma.done [#allocation3], 128
    $region17: #{tpu_custom_call.1} parent=1 // pred_fallthru
      _
    // Predicated region
    $region18: #{tpu_custom_call.1} parent=1 // pred_check
      _
    $region19: #{tpu_custom_call.1} parent=1 // pred_check_branch
      %39 = sbr.rel (0) target = $region21
    $region20: #{tpu_custom_call.1} parent=1 // pred_region
      %40 = dma.done [#allocation6], 512
    $region21: #{tpu_custom_call.1} parent=1 // pred_fallthru
      _
    %v41 = vld [vmem:[#allocation2] sm:$0xff]
    %v42 = vld [vmem:[#allocation5] sm:$0xff]
    %v43 = vld [vmem:[#allocation5 + $0x8] sm:$0xff]
    %v44 = vld [vmem:[#allocation5 + $0x10] sm:$0xff]
    %v45 = vld [vmem:[#allocation5 + $0x18] sm:$0xff]
    %v46 = vld [vmem:[%s2] sm:$0x1]
    %v48 = vlaneseq
    %v49 = vshrl.u32 %v48, 7
    %v50 = vsub.s32 0, %v49
    %v51 = vrot.slane %v46, %v50
    %vm53 = vcmask 261120
    %v55 = vsel %vm53, %v41, 0
    %57 = vmatprep.subr.mxu0 0.0
    %58 = vmatpush1.msra.mxu0 0.0
    %59 = vmatprep.subr.mxu0 0.0
    %60 = vmatpush1.msra.mxu0 0.0
    %61 = vmatprep.subr.mxu0 0.0
    %62 = vmatpush1.msra.mxu0 0.0
    %63 = vmatprep.subr.mxu0 0.0
    %64 = vmatpush1.msra.mxu0 0.0
    %65 = vmatprep.subr.mxu0 0.0
    %66 = vmatpush1.msra.mxu0 0.0
    %67 = vmatprep.subr.mxu0 0.0
    %68 = vmatpush1.msra.mxu0 0.0
    %69 = vmatprep.subr.mxu0 0.0
    %70 = vmatpush1.msra.mxu0 0.0
    %71 = vmatprep.subr.mxu0 0.0
    %72 = vmatpush1.msra.mxu0 0.0
    %73 = vmatprep.subr.mxu0 0.0
    %74 = vmatpush1.msra.mxu0 0.0
    %75 = vmatprep.subr.mxu0 0.0
    %76 = vmatpush1.msra.mxu0 0.0
    %77 = vmatprep.subr.mxu0 0.0
    %78 = vmatpush1.msra.mxu0 0.0
    %79 = vmatprep.subr.mxu0 0.0
    %80 = vmatpush1.msra.mxu0 0.0
    %81 = vmatprep.subr.mxu0 0.0
    %82 = vmatpush1.msra.mxu0 %v45
    %83 = vmatprep.subr.mxu0 0.0
    %84 = vmatpush1.msra.mxu0 %v44
    %85 = vmatprep.subr.mxu0 0.0
    %86 = vmatpush1.msra.mxu0 %v43
    %87 = vmatprep.subr.mxu0 0.0
    %88 = vmatpush1.msra.mxu0 %v42
    %89 = vmatprep.subr.mxu0 0.0
    %90 = vmatpush2.msra.mxu0 0.0
    %91 = vmatprep.subr.mxu0 0.0
    %92 = vmatpush2.msra.mxu0 0.0
    %93 = vmatprep.subr.mxu0 0.0
    %94 = vmatpush2.msra.mxu0 0.0
    %95 = vmatprep.subr.mxu0 0.0
    %96 = vmatpush2.msra.mxu0 0.0
    %97 = vmatprep.subr.mxu0 0.0
    %98 = vmatpush2.msra.mxu0 0.0
    %99 = vmatprep.subr.mxu0 0.0
    %100 = vmatpush2.msra.mxu0 0.0
    %101 = vmatprep.subr.mxu0 0.0
    %102 = vmatpush2.msra.mxu0 0.0
    %103 = vmatprep.subr.mxu0 0.0
    %104 = vmatpush2.msra.mxu0 0.0
    %105 = vmatprep.subr.mxu0 0.0
    %106 = vmatpush2.msra.mxu0 0.0
    %107 = vmatprep.subr.mxu0 0.0
    %108 = vmatpush2.msra.mxu0 0.0
    %109 = vmatprep.subr.mxu0 0.0
    %110 = vmatpush2.msra.mxu0 0.0
    %111 = vmatprep.subr.mxu0 0.0
    %112 = vmatpush2.msra.mxu0 0.0
    %113 = vmatprep.subr.mxu0 0.0
    %114 = vmatpush2.msra.mxu0 0.0
    %115 = vmatprep.subr.mxu0 0.0
    %116 = vmatpush2.msra.mxu0 0.0
    %117 = vmatprep.subr.mxu0 0.0
    %118 = vmatpush2.msra.mxu0 0.0
    %119 = vmatprep.subr.mxu0 0.0
    %120 = vmatpush2.msra.mxu0 0.0
    %121 = vmatprep.mubr.f32.mxu0 0.0
    %122 = vmatmul.mubr.f32.gmra.mxu0 %v55
    %v123 = vpop.f32.mrf.mxu0
    %v124 = vadd.f32 %v51, %v123
    %v125 = vpop.f32.mrf.mxu0
    %126 = vdwg.mxu0
    %127 = vst [vmem:[#allocation7] sm:$0xff] %v124
    // Predicated region
    $region22: #{tpu_custom_call.1} parent=1 // pred_check
      _
    $region23: #{tpu_custom_call.1} parent=1 // pred_check_branch
      %129 = sbr.rel (0) target = $region25
    $region24: #{tpu_custom_call.1} parent=1 // pred_region
      %s131 = ssub.s32 128, 128
      %132 = vsyncadd [#allocation4], %s131
      %s134 = sshll.u32 [#allocation7], 4
      %s135 = int_to_ptr.vmem [resolvable:$true] %s134
      %137 = dma.vmem_to_hbm [thread:$0]  %s135, 128, %s3, [#allocation4]
    $region25: #{tpu_custom_call.1} parent=1 // pred_fallthru
      _
    // Predicated region
    $region26: #{tpu_custom_call.1} parent=1 // pred_check
      _
    $region27: #{tpu_custom_call.1} parent=1 // pred_check_branch
      %139 = sbr.rel (0) target = $region29
    $region28: #{tpu_custom_call.1} parent=1 // pred_region
      %140 = dma.done [#allocation4], 128
    $region29: #{tpu_custom_call.1} parent=1 // pred_fallthru
      _
    %141 = vsyncpa [#allocation3], 1
    %142 = vsyncpa [#allocation6], 1
    %143 = vsyncpa [#allocation4], 1

</llo_original>
